<compile_context>
chip_gen: v5e
topology: v5e:2x2
jax: 0.10.0
libtpu: 0.0.40
codegen_flags: <defaults>
</compile_context>

<pallas_src>
import functools
import math

import jax
import jax.numpy as jnp
from jax.experimental import pallas as pl
from jax.experimental.pallas import tpu as pltpu


def afd_kernel(fm_s_ref, fm_t_ref, w1_ref, b1_ref, w2_ref, b2_ref, out_ref,
               ss_ref, tt_ref, hid_ref, num_ref, den_ref,
               *, n_chunks, hw, bt, true_b, eps):
    inv_hw = 1.0 / hw

    # Scratch persists across grid steps -> re-zero the accumulators.
    hid_ref[...] = jnp.zeros_like(hid_ref)
    num_ref[...] = jnp.zeros_like(num_ref)
    den_ref[...] = jnp.zeros_like(den_ref)

    # ---- pass 1: per-channel spatial stats + pooled @ W1, one channel-chunk
    # at a time so only (Bt, CC, HW)-sized f32 temporaries ever exist.
    @pl.loop(0, n_chunks)
    def _(k):
        sc = fm_s_ref[:, k].astype(jnp.float32)            # (Bt, CC, HW)
        tc = fm_t_ref[:, k].astype(jnp.float32)
        ss_ref[k] = jnp.sum(sc * sc, axis=-1)              # (Bt, CC)
        tt_ref[k] = jnp.sum(tc * tc, axis=-1)
        pooled = jnp.sum(tc, axis=-1) * inv_hw             # adaptive_avg_pool2d(.,1)
        hid_ref[...] += jnp.dot(pooled, w1_ref[k],
                                preferred_element_type=jnp.float32)  # (Bt, mid)

    hidden = jnp.maximum(hid_ref[...] + b1_ref[...], 0.0)  # ReLU, (Bt, mid)

    # ---- pass 2: channel-wise L2 normalization + attention-weighted MSE.
    #   loss_row = sum_c rho_c * msd_c,  rho = sigmoid(logit)/sum(sigmoid)
    #            = (sum_c sig_c * msd_c) / (sum_c sig_c)
    @pl.loop(0, n_chunks)
    def _(k):
        sc = fm_s_ref[:, k].astype(jnp.float32)
        tc = fm_t_ref[:, k].astype(jnp.float32)
        inv_ns = 1.0 / (jnp.sqrt(ss_ref[k]) + eps)          # (Bt, CC)
        inv_nt = 1.0 / (jnp.sqrt(tt_ref[k]) + eps)
        # Direct (s/|s| - t/|t|)^2 form: numerically safer near convergence.
        # TODO(synk): on v7x (VALU-bound) the expanded ss/st/tt single-pass form
        # would save ~4 VPU ops/element; kept direct for numerical robustness.
        diff = sc * inv_ns[..., None] - tc * inv_nt[..., None]
        msd = jnp.sum(diff * diff, axis=-1) * inv_hw         # (Bt, CC)
        logit = jnp.dot(hidden, w2_ref[k],
                        preferred_element_type=jnp.float32) + b2_ref[k]
        sig = jax.nn.sigmoid(logit)                          # (Bt, CC)
        num_ref[...] += jnp.sum(sig * msd, axis=-1, keepdims=True)   # (Bt, 1)
        den_ref[...] += jnp.sum(sig, axis=-1, keepdims=True)

    loss = num_ref[...] / den_ref[...]                       # (Bt, 1)
    if true_b % bt:   # ragged last tile: zero the rows past the true batch
        row = (jax.lax.broadcasted_iota(jnp.int32, (bt, 1), 0)
               + pl.program_id(0) * bt)
        loss = jnp.where(row < true_b, loss, 0.0)
    out_ref[...] = loss[None]                                 # (1, Bt, 1)


def _vmem_capacity_bytes(default=64 << 20):
    try:
        cap = int(getattr(pltpu.get_tpu_info(), "vmem_capacity_bytes", default))
        return cap if cap > 0 else default
    except Exception:
        return default


def _pick_bt(B, bt_target):
    """Largest divisor of B <= target if it is close to the target (no ragged
    tile); otherwise use the target and mask the ragged last tile in-kernel."""
    best = 1
    for n in range(1, bt_target + 1):
        if B % n == 0:
            best = n
    return best if best * 3 >= bt_target * 2 else bt_target


def _pick_n_chunks(C, Bt, HW, temp_budget):
    """Smallest number of channel chunks (dividing C) whose f32 temps fit."""
    divisors = [n for n in range(1, C + 1) if C % n == 0]
    fits = [n for n in divisors if 5 * Bt * (C // n) * HW * 4 <= temp_budget]
    if not fits:
        return divisors[-1]                   # finest possible chunking
    aligned = [n for n in fits if n == 1 or (C // n) % 8 == 0]
    return (aligned or fits)[0]


def afd_loss(fm_s, fm_t, w1, b1, w2, b2, eps=1e-6):
    """fm_s, fm_t: (B,C,H,W); w1: (mid,C,1,1); b1: (mid,); w2: (C,mid,1,1); b2: (C,)."""
    B, C, H, W = fm_s.shape
    HW = H * W
    mid = w1.shape[0]
    itemsize = jnp.dtype(fm_s.dtype).itemsize

    # ---- generation-aware VMEM / tile sizing --------------------------------
    usable = int(_vmem_capacity_bytes() * 0.75)   # ~96 MiB v5e/v6e, ~48 MiB v7x
    margin = 4 << 20                               # weights, out buffers, misc
    temp_budget = min(usable // 3, 16 << 20)       # in-kernel f32 chunk temporaries
    pipe_budget = max(usable - temp_budget - margin, 8 << 20)

    per_row_in = C * HW * itemsize                 # bytes per batch row per input
    bt_vmem = max(1, pipe_budget // (4 * per_row_in))   # 2 inputs x 2 pipeline bufs
    bt_dma = max(1, (12 << 20) // per_row_in)            # ~12 MiB DMA per input/step
    bt_target = int(min(bt_vmem, bt_dma, B))
    if B >= 2:
        bt_target = min(bt_target, (B + 1) // 2)  # keep >= 2 grid steps (v7x megacore)
    Bt = _pick_bt(B, max(1, bt_target))
    n_tiles = -(-B // Bt)

    n_chunks = _pick_n_chunks(C, Bt, HW, temp_budget)
    CC = C // n_chunks

    # Free (layout-preserving) reshapes: flatten spatial, split channels into
    # chunks so the kernel indexes chunk k on a leading dim.  No jnp.pad, so no
    # extra HBM pass even for 7x7 / 14x14 / ... maps or ragged batches.
    s = fm_s.reshape(B, n_chunks, CC, HW)
    t = fm_t.reshape(B, n_chunks, CC, HW)

    # Tiny attention weights, pre-transposed + chunked:
    #   hidden += pooled_k @ w1r[k]      with w1r[k]: (CC, mid)
    #   logit_k = hidden @ w2r[k] + b2r[k]  with w2r[k]: (mid, CC)
    w1r = w1.reshape(mid, C).astype(jnp.float32).T.reshape(n_chunks, CC, mid)
    w2r = (w2.reshape(C, mid).astype(jnp.float32).T
             .reshape(mid, n_chunks, CC).transpose(1, 0, 2))
    b1r = b1.reshape(1, mid).astype(jnp.float32)
    b2r = b2.reshape(n_chunks, 1, CC).astype(jnp.float32)

    # TODO(synk): a single batch row with C*HW*itemsize >> pipe_budget/4 would
    # additionally need a spatial grid axis; not implemented.

    kernel = functools.partial(afd_kernel, n_chunks=n_chunks, hw=float(HW),
                               bt=Bt, true_b=B, eps=float(eps))
    per_row = pl.pallas_call(
        kernel,
        out_shape=jax.ShapeDtypeStruct((n_tiles, Bt, 1), jnp.float32),
        grid_spec=pltpu.PrefetchScalarGridSpec(
            num_scalar_prefetch=0,
            grid=(n_tiles,),
            in_specs=[
                pl.BlockSpec((Bt, n_chunks, CC, HW), lambda i: (i, 0, 0, 0)),
                pl.BlockSpec((Bt, n_chunks, CC, HW), lambda i: (i, 0, 0, 0)),
                pl.BlockSpec((n_chunks, CC, mid), lambda i: (0, 0, 0)),
                pl.BlockSpec((1, mid), lambda i: (0, 0)),
                pl.BlockSpec((n_chunks, mid, CC), lambda i: (0, 0, 0)),
                pl.BlockSpec((n_chunks, 1, CC), lambda i: (0, 0, 0)),
            ],
            out_specs=pl.BlockSpec((1, Bt, 1), lambda i: (i, 0, 0)),
            scratch_shapes=[
                pltpu.VMEM((n_chunks, Bt, CC), jnp.float32),   # ss: per-channel |s|^2
                pltpu.VMEM((n_chunks, Bt, CC), jnp.float32),   # tt: per-channel |t|^2
                pltpu.VMEM((Bt, mid), jnp.float32),            # pooled @ W1 accumulator
                pltpu.VMEM((Bt, 1), jnp.float32),              # sum_c sig*msd
                pltpu.VMEM((Bt, 1), jnp.float32),              # sum_c sig
            ],
        ),
        compiler_params=pltpu.CompilerParams(
            dimension_semantics=("parallel",),
            vmem_limit_bytes=usable),
    )(s, t, w1r, b1r, w2r, b2r)

    # Per-row losses (masked/ragged rows are exactly 0) -> mean over true batch.
    return per_row.sum() / B


def afd_ref(fm_s, fm_t, w1, b1, w2, b2, eps=1e-6):
    """Pure-JAX reference mirroring the PyTorch forward."""
    B, C, H, W = fm_s.shape
    mid = w1.shape[0]
    pooled = fm_t.astype(jnp.float32).mean(axis=(2, 3))              # (B, C)
    hidden = jax.nn.relu(pooled @ w1.reshape(mid, C).T + b1)         # (B, mid)
    logit = hidden @ w2.reshape(C, mid).T + b2                       # (B, C)
    rho = jax.nn.sigmoid(logit)
    rho = rho / rho.sum(axis=1, keepdims=True)
    fs = fm_s.astype(jnp.float32)
    ft = fm_t.astype(jnp.float32)
    sn = jnp.sqrt((fs ** 2).sum(axis=(2, 3), keepdims=True))
    tn = jnp.sqrt((ft ** 2).sum(axis=(2, 3), keepdims=True))
    sh = fs / (sn + eps)
    th = ft / (tn + eps)
    loss = (rho * ((sh - th) ** 2).mean(axis=(2, 3))).sum(1).mean(0)
    return loss


def _make_params(key, C, att_f):
    mid = int(C * att_f)
    k_w1, k_w2 = jax.random.split(key)
    # kaiming_normal_(mode='fan_out', relu): std = sqrt(2 / fan_out)
    w1 = jax.random.normal(k_w1, (mid, C, 1, 1), jnp.float32) * math.sqrt(2.0 / mid)
    b1 = jnp.zeros((mid,), jnp.float32)
    w2 = jax.random.normal(k_w2, (C, mid, 1, 1), jnp.float32) * math.sqrt(2.0 / C)
    b2 = jnp.zeros((C,), jnp.float32)
    return w1, b1, w2, b2


if __name__ == "__main__":
    key = jax.random.PRNGKey(0)
    k_s, k_t, k_p, k_s2, k_t2, k_p2 = jax.random.split(key, 6)

    # Case 1: small shapes consistent with the module (in_channels=16, att_f=0.5)
    B, C, H, W = 2, 16, 16, 16
    fm_s = jax.random.normal(k_s, (B, C, H, W), jnp.float32)
    fm_t = jax.random.normal(k_t, (B, C, H, W), jnp.float32)
    w1, b1, w2, b2 = _make_params(k_p, C, 0.5)

    loss = jax.block_until_ready(afd_loss(fm_s, fm_t, w1, b1, w2, b2))
    ref = afd_ref(fm_s, fm_t, w1, b1, w2, b2)
    assert jnp.allclose(loss, ref, rtol=1e-4, atol=1e-6), (loss, ref)

    # bf16 inputs (autocast-like path): no wrapper up-cast, kernel casts in VMEM.
    loss_bf16 = jax.block_until_ready(
        afd_loss(fm_s.astype(jnp.bfloat16), fm_t.astype(jnp.bfloat16), w1, b1, w2, b2))
    ref_bf16 = afd_ref(fm_s.astype(jnp.bfloat16), fm_t.astype(jnp.bfloat16),
                       w1, b1, w2, b2)
    assert jnp.allclose(loss_bf16, ref_bf16, rtol=2e-2, atol=1e-4), (loss_bf16, ref_bf16)

    # Case 2: 7x7 spatial (H*W = 49, NOT a multiple of 128) -> exercises the
    # pad-free block path that was the main perf fix.
    B2, C2, H2, W2 = 4, 32, 7, 7
    fm_s2 = jax.random.normal(k_s2, (B2, C2, H2, W2), jnp.float32)
    fm_t2 = jax.random.normal(k_t2, (B2, C2, H2, W2), jnp.float32)
    w1b, b1b, w2b, b2b = _make_params(k_p2, C2, 0.5)
    loss2 = jax.block_until_ready(afd_loss(fm_s2, fm_t2, w1b, b1b, w2b, b2b))
    ref2 = afd_ref(fm_s2, fm_t2, w1b, b1b, w2b, b2b)
    assert jnp.allclose(loss2, ref2, rtol=1e-4, atol=1e-6), (loss2, ref2)

    print("KERNEL_OK")
</pallas_src>

<mosaic_0001>
module attributes {stable_mosaic.version = 11 : i64} {
  func.func @afd_kernel(%arg0: i32, %arg1: memref<1x1x16x256xf32, #tpu.memory_space<vmem>>, %arg2: memref<1x1x16x256xf32, #tpu.memory_space<vmem>>, %arg3: memref<1x16x8xf32, #tpu.memory_space<vmem>>, %arg4: memref<1x8xf32, #tpu.memory_space<vmem>>, %arg5: memref<1x8x16xf32, #tpu.memory_space<vmem>>, %arg6: memref<1x1x16xf32, #tpu.memory_space<vmem>>, %arg7: memref<1x1x1xf32, #tpu.memory_space<vmem>>, %arg8: memref<1x1x16xf32, #tpu.memory_space<vmem>>, %arg9: memref<1x1x16xf32, #tpu.memory_space<vmem>>, %arg10: memref<1x8xf32, #tpu.memory_space<vmem>>, %arg11: memref<1x1xf32, #tpu.memory_space<vmem>>, %arg12: memref<1x1xf32, #tpu.memory_space<vmem>>) attributes {dimension_semantics = [#tpu.dimension_semantics<parallel>], iteration_bounds = array<i64: 2>, scalar_prefetch = 0 : i64, scratch_operands = 5 : i64, tpu.core_type = #tpu.core_type<tc>, window_params = [{transform_indices = @transform_0, window_bounds = array<i64: 1, 1, 16, 256>}, {transform_indices = @transform_1, window_bounds = array<i64: 1, 1, 16, 256>}, {pipeline_mode = #tpu.pipeline_mode<synchronous>, transform_indices = @transform_2, window_bounds = array<i64: 1, 16, 8>}, {pipeline_mode = #tpu.pipeline_mode<synchronous>, transform_indices = @transform_3, window_bounds = array<i64: 1, 8>}, {pipeline_mode = #tpu.pipeline_mode<synchronous>, transform_indices = @transform_4, window_bounds = array<i64: 1, 8, 16>}, {pipeline_mode = #tpu.pipeline_mode<synchronous>, transform_indices = @transform_5, window_bounds = array<i64: 1, 1, 16>}, {transform_indices = @transform_6, window_bounds = array<i64: 1, 1, 1>}]} {
    %cst = arith.constant 0.000000e+00 : f32
    %0 = vector.broadcast %cst : f32 to vector<1x8xf32>
    %c0 = arith.constant 0 : index
    %c0_0 = arith.constant 0 : index
    %1 = vector.load %arg10[%c0, %c0_0] : memref<1x8xf32, #tpu.memory_space<vmem>>, vector<1x8xf32>
    tpu.vector_store %arg10[%c0, %c0_0], %0 {strides = array<i32>} : memref<1x8xf32, #tpu.memory_space<vmem>>, vector<1x8xf32>,
    %cst_1 = arith.constant 0.000000e+00 : f32
    %2 = vector.broadcast %cst_1 : f32 to vector<1x1xf32>
    %c0_2 = arith.constant 0 : index
    %c0_3 = arith.constant 0 : index
    %3 = vector.load %arg11[%c0_2, %c0_3] : memref<1x1xf32, #tpu.memory_space<vmem>>, vector<1x1xf32>
    tpu.vector_store %arg11[%c0_2, %c0_3], %2 {strides = array<i32>} : memref<1x1xf32, #tpu.memory_space<vmem>>, vector<1x1xf32>,
    %cst_4 = arith.constant 0.000000e+00 : f32
    %4 = vector.broadcast %cst_4 : f32 to vector<1x1xf32>
    %c0_5 = arith.constant 0 : index
    %c0_6 = arith.constant 0 : index
    %5 = vector.load %arg12[%c0_5, %c0_6] : memref<1x1xf32, #tpu.memory_space<vmem>>, vector<1x1xf32>
    tpu.vector_store %arg12[%c0_5, %c0_6], %4 {strides = array<i32>} : memref<1x1xf32, #tpu.memory_space<vmem>>, vector<1x1xf32>,
    %c0_i32 = arith.constant 0 : i32
    %c1_i32 = arith.constant 1 : i32
    %6 = arith.muli %c0_i32, %c1_i32 : i32
    %c0_i32_7 = arith.constant 0 : i32
    %7 = arith.addi %c0_i32_7, %6 : i32
    %c0_8 = arith.constant 0 : index
    %8 = arith.index_cast %7 : i32 to index
    %c0_9 = arith.constant 0 : index
    %c0_10 = arith.constant 0 : index
    %9 = vector.load %arg1[%c0_8, %8, %c0_9, %c0_10] : memref<1x1x16x256xf32, #tpu.memory_space<vmem>>, vector<1x1x16x256xf32>
    %10 = vector.shape_cast %9 : vector<1x1x16x256xf32> to vector<1x16x256xf32>
    %c0_11 = arith.constant 0 : index
    %11 = arith.index_cast %7 : i32 to index
    %c0_12 = arith.constant 0 : index
    %c0_13 = arith.constant 0 : index
    %12 = vector.load %arg2[%c0_11, %11, %c0_12, %c0_13] : memref<1x1x16x256xf32, #tpu.memory_space<vmem>>, vector<1x1x16x256xf32>
    %13 = vector.shape_cast %12 : vector<1x1x16x256xf32> to vector<1x16x256xf32>
    %14 = arith.mulf %10, %10 : vector<1x16x256xf32>
    %cst_14 = arith.constant dense<0.000000e+00> : vector<1x16xf32>
    %15 = vector.multi_reduction <add>, %14, %cst_14 [2] : vector<1x16x256xf32> to vector<1x16xf32>
    %16 = arith.index_cast %7 : i32 to index
    %c0_15 = arith.constant 0 : index
    %c0_16 = arith.constant 0 : index
    %17 = vector.load %arg8[%16, %c0_15, %c0_16] : memref<1x1x16xf32, #tpu.memory_space<vmem>>, vector<1x1x16xf32>
    %18 = vector.shape_cast %17 : vector<1x1x16xf32> to vector<1x16xf32>
    %19 = vector.shape_cast %15 : vector<1x16xf32> to vector<1x1x16xf32>
    tpu.vector_store %arg8[%16, %c0_15, %c0_16], %19 {strides = array<i32>} : memref<1x1x16xf32, #tpu.memory_space<vmem>>, vector<1x1x16xf32>,
    %20 = arith.mulf %13, %13 : vector<1x16x256xf32>
    %cst_17 = arith.constant dense<0.000000e+00> : vector<1x16xf32>
    %21 = vector.multi_reduction <add>, %20, %cst_17 [2] : vector<1x16x256xf32> to vector<1x16xf32>
    %22 = arith.index_cast %7 : i32 to index
    %c0_18 = arith.constant 0 : index
    %c0_19 = arith.constant 0 : index
    %23 = vector.load %arg9[%22, %c0_18, %c0_19] : memref<1x1x16xf32, #tpu.memory_space<vmem>>, vector<1x1x16xf32>
    %24 = vector.shape_cast %23 : vector<1x1x16xf32> to vector<1x16xf32>
    %25 = vector.shape_cast %21 : vector<1x16xf32> to vector<1x1x16xf32>
    tpu.vector_store %arg9[%22, %c0_18, %c0_19], %25 {strides = array<i32>} : memref<1x1x16xf32, #tpu.memory_space<vmem>>, vector<1x1x16xf32>,
    %cst_20 = arith.constant dense<0.000000e+00> : vector<1x16xf32>
    %26 = vector.multi_reduction <add>, %13, %cst_20 [2] : vector<1x16x256xf32> to vector<1x16xf32>
    %cst_21 = arith.constant 3.906250e-03 : f32
    %27 = vector.broadcast %cst_21 : f32 to vector<1x16xf32>
    %28 = arith.mulf %26, %27 : vector<1x16xf32>
    %c0_22 = arith.constant 0 : index
    %c0_23 = arith.constant 0 : index
    %29 = vector.load %arg10[%c0_22, %c0_23] : memref<1x8xf32, #tpu.memory_space<vmem>>, vector<1x8xf32>
    %30 = arith.index_cast %7 : i32 to index
    %c0_24 = arith.constant 0 : index
    %c0_25 = arith.constant 0 : index
    %31 = vector.load %arg3[%30, %c0_24, %c0_25] : memref<1x16x8xf32, #tpu.memory_space<vmem>>, vector<1x16x8xf32>
    %32 = vector.shape_cast %31 : vector<1x16x8xf32> to vector<16x8xf32>
    %cst_26 = arith.constant dense<0.000000e+00> : vector<1x8xf32>
    %33 = tpu.matmul %28, %32, %cst_26 {dimension_numbers = #tpu.dot_dimension_numbers<[1], [0], [0], [1], [0, 0, 1, 1], [], []>} : vector<1x16xf32>, vector<16x8xf32>, vector<1x8xf32> -> vector<1x8xf32>
    %34 = arith.addf %29, %33 : vector<1x8xf32>
    %c0_27 = arith.constant 0 : index
    %c0_28 = arith.constant 0 : index
    %35 = vector.load %arg10[%c0_27, %c0_28] : memref<1x8xf32, #tpu.memory_space<vmem>>, vector<1x8xf32>
    tpu.vector_store %arg10[%c0_27, %c0_28], %34 {strides = array<i32>} : memref<1x8xf32, #tpu.memory_space<vmem>>, vector<1x8xf32>,
    %c1_i32_29 = arith.constant 1 : i32
    %c0_30 = arith.constant 0 : index
    %c0_31 = arith.constant 0 : index
    %36 = vector.load %arg10[%c0_30, %c0_31] : memref<1x8xf32, #tpu.memory_space<vmem>>, vector<1x8xf32>
    %c0_32 = arith.constant 0 : index
    %c0_33 = arith.constant 0 : index
    %37 = vector.load %arg4[%c0_32, %c0_33] : memref<1x8xf32, #tpu.memory_space<vmem>>, vector<1x8xf32>
    %38 = arith.addf %36, %37 : vector<1x8xf32>
    %cst_34 = arith.constant 0.000000e+00 : f32
    %39 = vector.broadcast %cst_34 : f32 to vector<1x8xf32>
    %40 = arith.maximumf %38, %39 : vector<1x8xf32>
    %c0_i32_35 = arith.constant 0 : i32
    %c1_i32_36 = arith.constant 1 : i32
    %41 = arith.muli %c0_i32_35, %c1_i32_36 : i32
    %c0_i32_37 = arith.constant 0 : i32
    %42 = arith.addi %c0_i32_37, %41 : i32
    %c0_38 = arith.constant 0 : index
    %43 = arith.index_cast %42 : i32 to index
    %c0_39 = arith.constant 0 : index
    %c0_40 = arith.constant 0 : index
    %44 = vector.load %arg1[%c0_38, %43, %c0_39, %c0_40] : memref<1x1x16x256xf32, #tpu.memory_space<vmem>>, vector<1x1x16x256xf32>
    %45 = vector.shape_cast %44 : vector<1x1x16x256xf32> to vector<1x16x256xf32>
    %c0_41 = arith.constant 0 : index
    %46 = arith.index_cast %42 : i32 to index
    %c0_42 = arith.constant 0 : index
    %c0_43 = arith.constant 0 : index
    %47 = vector.load %arg2[%c0_41, %46, %c0_42, %c0_43] : memref<1x1x16x256xf32, #tpu.memory_space<vmem>>, vector<1x1x16x256xf32>
    %48 = vector.shape_cast %47 : vector<1x1x16x256xf32> to vector<1x16x256xf32>
    %49 = arith.index_cast %42 : i32 to index
    %c0_44 = arith.constant 0 : index
    %c0_45 = arith.constant 0 : index
    %50 = vector.load %arg8[%49, %c0_44, %c0_45] : memref<1x1x16xf32, #tpu.memory_space<vmem>>, vector<1x1x16xf32>
    %51 = vector.shape_cast %50 : vector<1x1x16xf32> to vector<1x16xf32>
    %52 = math.sqrt %51 : vector<1x16xf32>
    %cst_46 = arith.constant 9.99999997E-7 : f32
    %53 = vector.broadcast %cst_46 : f32 to vector<1x16xf32>
    %54 = arith.addf %52, %53 : vector<1x16xf32>
    %cst_47 = arith.constant 1.000000e+00 : f32
    %55 = vector.broadcast %cst_47 : f32 to vector<1x16xf32>
    %56 = arith.divf %55, %54 : vector<1x16xf32>
    %57 = arith.index_cast %42 : i32 to index
    %c0_48 = arith.constant 0 : index
    %c0_49 = arith.constant 0 : index
    %58 = vector.load %arg9[%57, %c0_48, %c0_49] : memref<1x1x16xf32, #tpu.memory_space<vmem>>, vector<1x1x16xf32>
    %59 = vector.shape_cast %58 : vector<1x1x16xf32> to vector<1x16xf32>
    %60 = math.sqrt %59 : vector<1x16xf32>
    %cst_50 = arith.constant 9.99999997E-7 : f32
    %61 = vector.broadcast %cst_50 : f32 to vector<1x16xf32>
    %62 = arith.addf %60, %61 : vector<1x16xf32>
    %cst_51 = arith.constant 1.000000e+00 : f32
    %63 = vector.broadcast %cst_51 : f32 to vector<1x16xf32>
    %64 = arith.divf %63, %62 : vector<1x16xf32>
    %65 = vector.shape_cast %56 : vector<1x16xf32> to vector<1x16x1xf32>
    %66 = vector.broadcast %65 : vector<1x16x1xf32> to vector<1x16x256xf32>
    %67 = arith.mulf %45, %66 : vector<1x16x256xf32>
    %68 = vector.shape_cast %64 : vector<1x16xf32> to vector<1x16x1xf32>
    %69 = vector.broadcast %68 : vector<1x16x1xf32> to vector<1x16x256xf32>
    %70 = arith.mulf %48, %69 : vector<1x16x256xf32>
    %71 = arith.subf %67, %70 : vector<1x16x256xf32>
    %72 = arith.mulf %71, %71 : vector<1x16x256xf32>
    %cst_52 = arith.constant dense<0.000000e+00> : vector<1x16xf32>
    %73 = vector.multi_reduction <add>, %72, %cst_52 [2] : vector<1x16x256xf32> to vector<1x16xf32>
    %cst_53 = arith.constant 3.906250e-03 : f32
    %74 = vector.broadcast %cst_53 : f32 to vector<1x16xf32>
    %75 = arith.mulf %73, %74 : vector<1x16xf32>
    %76 = arith.index_cast %42 : i32 to index
    %c0_54 = arith.constant 0 : index
    %c0_55 = arith.constant 0 : index
    %77 = vector.load %arg5[%76, %c0_54, %c0_55] : memref<1x8x16xf32, #tpu.memory_space<vmem>>, vector<1x8x16xf32>
    %78 = vector.shape_cast %77 : vector<1x8x16xf32> to vector<8x16xf32>
    %cst_56 = arith.constant dense<0.000000e+00> : vector<1x16xf32>
    %79 = tpu.matmul %40, %78, %cst_56 {dimension_numbers = #tpu.dot_dimension_numbers<[1], [0], [0], [1], [0, 0, 1, 1], [], []>} : vector<1x8xf32>, vector<8x16xf32>, vector<1x16xf32> -> vector<1x16xf32>
    %80 = arith.index_cast %42 : i32 to index
    %c0_57 = arith.constant 0 : index
    %c0_58 = arith.constant 0 : index
    %81 = vector.load %arg6[%80, %c0_57, %c0_58] : memref<1x1x16xf32, #tpu.memory_space<vmem>>, vector<1x1x16xf32>
    %82 = vector.shape_cast %81 : vector<1x1x16xf32> to vector<1x16xf32>
    %83 = arith.addf %79, %82 : vector<1x16xf32>
    %84 = arith.negf %83 : vector<1x16xf32>
    %85 = math.exp %84 : vector<1x16xf32>
    %cst_59 = arith.constant 1.000000e+00 : f32
    %86 = vector.broadcast %cst_59 : f32 to vector<1x16xf32>
    %87 = arith.addf %86, %85 : vector<1x16xf32>
    %88 = arith.divf %86, %87 : vector<1x16xf32>
    %c0_60 = arith.constant 0 : index
    %c0_61 = arith.constant 0 : index
    %89 = vector.load %arg11[%c0_60, %c0_61] : memref<1x1xf32, #tpu.memory_space<vmem>>, vector<1x1xf32>
    %90 = arith.mulf %88, %75 : vector<1x16xf32>
    %cst_62 = arith.constant dense<0.000000e+00> : vector<1xf32>
    %91 = vector.multi_reduction <add>, %90, %cst_62 [1] : vector<1x16xf32> to vector<1xf32>
    %92 = vector.shape_cast %91 : vector<1xf32> to vector<1x1xf32>
    %93 = arith.addf %89, %92 : vector<1x1xf32>
    %c0_63 = arith.constant 0 : index
    %c0_64 = arith.constant 0 : index
    %94 = vector.load %arg11[%c0_63, %c0_64] : memref<1x1xf32, #tpu.memory_space<vmem>>, vector<1x1xf32>
    tpu.vector_store %arg11[%c0_63, %c0_64], %93 {strides = array<i32>} : memref<1x1xf32, #tpu.memory_space<vmem>>, vector<1x1xf32>,
    %c0_65 = arith.constant 0 : index
    %c0_66 = arith.constant 0 : index
    %95 = vector.load %arg12[%c0_65, %c0_66] : memref<1x1xf32, #tpu.memory_space<vmem>>, vector<1x1xf32>
    %cst_67 = arith.constant dense<0.000000e+00> : vector<1xf32>
    %96 = vector.multi_reduction <add>, %88, %cst_67 [1] : vector<1x16xf32> to vector<1xf32>
    %97 = vector.shape_cast %96 : vector<1xf32> to vector<1x1xf32>
    %98 = arith.addf %95, %97 : vector<1x1xf32>
    %c0_68 = arith.constant 0 : index
    %c0_69 = arith.constant 0 : index
    %99 = vector.load %arg12[%c0_68, %c0_69] : memref<1x1xf32, #tpu.memory_space<vmem>>, vector<1x1xf32>
    tpu.vector_store %arg12[%c0_68, %c0_69], %98 {strides = array<i32>} : memref<1x1xf32, #tpu.memory_space<vmem>>, vector<1x1xf32>,
    %c1_i32_70 = arith.constant 1 : i32
    %c0_71 = arith.constant 0 : index
    %c0_72 = arith.constant 0 : index
    %100 = vector.load %arg11[%c0_71, %c0_72] : memref<1x1xf32, #tpu.memory_space<vmem>>, vector<1x1xf32>
    %c0_73 = arith.constant 0 : index
    %c0_74 = arith.constant 0 : index
    %101 = vector.load %arg12[%c0_73, %c0_74] : memref<1x1xf32, #tpu.memory_space<vmem>>, vector<1x1xf32>
    %102 = arith.divf %100, %101 : vector<1x1xf32>
    %103 = vector.shape_cast %102 : vector<1x1xf32> to vector<1x1x1xf32>
    %c0_75 = arith.constant 0 : index
    %c0_76 = arith.constant 0 : index
    %c0_77 = arith.constant 0 : index
    %104 = vector.load %arg7[%c0_75, %c0_76, %c0_77] : memref<1x1x1xf32, #tpu.memory_space<vmem>>, vector<1x1x1xf32>
    tpu.vector_store %arg7[%c0_75, %c0_76, %c0_77], %103 {strides = array<i32>} : memref<1x1x1xf32, #tpu.memory_space<vmem>>, vector<1x1x1xf32>,
    return
  }
  func.func @transform_0(%arg0: i32) -> (i32, i32, i32, i32) {
    %c0_i32 = arith.constant 0 : i32
    %c0_i32_0 = arith.constant 0 : i32
    %c0_i32_1 = arith.constant 0 : i32
    %c0_i32_2 = arith.constant 0 : i32
    return %arg0, %c0_i32, %c0_i32_0, %c0_i32_1 : i32, i32, i32, i32
  }
  func.func @transform_1(%arg0: i32) -> (i32, i32, i32, i32) {
    %c0_i32 = arith.constant 0 : i32
    %c0_i32_0 = arith.constant 0 : i32
    %c0_i32_1 = arith.constant 0 : i32
    %c0_i32_2 = arith.constant 0 : i32
    return %arg0, %c0_i32, %c0_i32_0, %c0_i32_1 : i32, i32, i32, i32
  }
  func.func @transform_2(%arg0: i32) -> (i32, i32, i32) {
    %c0_i32 = arith.constant 0 : i32
    %c0_i32_0 = arith.constant 0 : i32
    %c0_i32_1 = arith.constant 0 : i32
    %c0_i32_2 = arith.constant 0 : i32
    return %c0_i32, %c0_i32_0, %c0_i32_1 : i32, i32, i32
  }
  func.func @transform_3(%arg0: i32) -> (i32, i32) {
    %c0_i32 = arith.constant 0 : i32
    %c0_i32_0 = arith.constant 0 : i32
    %c0_i32_1 = arith.constant 0 : i32
    return %c0_i32, %c0_i32_0 : i32, i32
  }
  func.func @transform_4(%arg0: i32) -> (i32, i32, i32) {
    %c0_i32 = arith.constant 0 : i32
    %c0_i32_0 = arith.constant 0 : i32
    %c0_i32_1 = arith.constant 0 : i32
    %c0_i32_2 = arith.constant 0 : i32
    return %c0_i32, %c0_i32_0, %c0_i32_1 : i32, i32, i32
  }
  func.func @transform_5(%arg0: i32) -> (i32, i32, i32) {
    %c0_i32 = arith.constant 0 : i32
    %c0_i32_0 = arith.constant 0 : i32
    %c0_i32_1 = arith.constant 0 : i32
    %c0_i32_2 = arith.constant 0 : i32
    return %c0_i32, %c0_i32_0, %c0_i32_1 : i32, i32, i32
  }
  func.func @transform_6(%arg0: i32) -> (i32, i32, i32) {
    %c0_i32 = arith.constant 0 : i32
    %c0_i32_0 = arith.constant 0 : i32
    %c0_i32_1 = arith.constant 0 : i32
    return %arg0, %c0_i32, %c0_i32_0 : i32, i32, i32
  }
}

</mosaic_0001>

<llo_original>
// kernel: tpu_custom_call.1
$region0: #{tpu_custom_call.1}
  #allocation0 [shape = 'u32[]', space=smem, size = 0x4, offset = 0x4, fixed_abs, tag = 'smem constant byte address 0x4 - core index']
  #allocation1 [shape = 'u32[72,128]{1,0:T(1,128)}', space=vmem, size = 0x9000, scoped, tag = 'internal scratch']
  #allocation2 [shape = 'f32[1,1,16]{2,1,0:T(1,128)}', space=vmem, size = 0x200, scoped, tag = 'scratch operand']
  #allocation3 [shape = 'f32[1,1,16]{2,1,0:T(1,128)}', space=vmem, size = 0x200, scoped, tag = 'scratch operand']
  #allocation4 [shape = 'f32[1,8]{1,0:T(1,128)}', space=vmem, size = 0x200, scoped, tag = 'scratch operand']
  #allocation5 [shape = 'f32[1,1]{1,0:T(1,128)}', space=vmem, size = 0x200, scoped, tag = 'scratch operand']
  #allocation6 [shape = 'f32[1,1]{1,0:T(1,128)}', space=vmem, size = 0x200, scoped, tag = 'scratch operand']
  %s0 = inlined_call_operand.hbm [shape: f32[2,1,16,256], index: 0, kind: input, shape index: {}]
  %s1 = inlined_call_operand.hbm [shape: f32[2,1,16,256], index: 1, kind: input, shape index: {}]
  %s2 = inlined_call_operand.vmem [shape: f32[1,16,8], index: 2, kind: input, shape index: {}]
  %s3 = inlined_call_operand.vmem [shape: f32[1,8], index: 3, kind: input, shape index: {}]
  %s4 = inlined_call_operand.vmem [shape: f32[1,8,16], index: 4, kind: input, shape index: {}]
  %s5 = inlined_call_operand.vmem [shape: f32[1,1,16], index: 5, kind: input, shape index: {}]
  %s6 = inlined_call_operand.vmem [shape: f32[2,1,1], index: 6, kind: output, shape index: {}]
  %s7 = sld [smem:[#allocation0]]
  $region65: #{tpu_custom_call.1} parent=0
    _
  %s9 = ssub.s32 1, %s7
  %s10 = scalar_select 0, %s9, %s7
  $region1: #{tpu_custom_call.1} parent=0
    #allocation7 [shape = 'u8[32768]{0}', space=vmem, size = 0x8000, scoped, tag = 'input window, operand 0']
    #allocation8 [shape = 's32[2]{0}', space=sflag, size = 0x8, scoped, tag = 'scoped memory for tpu_custom_call.1']
    #allocation9 [shape = 'u8[32768]{0}', space=vmem, size = 0x8000, scoped, tag = 'input window, operand 1']
    #allocation10 [shape = 's32[2]{0}', space=sflag, size = 0x8, scoped, tag = 'scoped memory for tpu_custom_call.1']
    %11 = vsyncpa [#allocation8], 0
    %s12 = scalar_lea.sflag [#allocation8], 1
    %13 = vsyncpa %s12, 0
    %14 = vsyncpa [#allocation10], 0
    %s15 = scalar_lea.sflag [#allocation10], 1
    %16 = vsyncpa %s15, 0
    loop: start=0, step=1, limit=4
    $region2: #{tpu_custom_call.1} parent=1 // loop_pre_header
      _
    $region3: #{tpu_custom_call.1} parent=1 // loop_header
      %s18 = sphi 0, %s22
      %p19 = scmp.ge.s32.totalorder %s18, 4
      %s28 = sphi 0, %s30
      %s31 = sphi 0, %s28
      %s32 = sphi 0, %s31
      %s48 = sphi 0, %s32
      %s54 = sphi 0, %s56
      %s57 = sphi 0, %s54
      %s58 = sphi 0, %s57
      %s74 = sphi 0, %s58
      %s78 = sphi 0, %s78
      %s80 = sphi 0, %s78
      %s81 = sphi 0, %s80
      %s95 = sphi 0, %s81
      %s99 = sphi 0, %s99
      %s101 = sphi 0, %s99
      %s102 = sphi 0, %s101
      %s116 = sphi 0, %s102
      %s120 = sphi 0, %s120
      %s122 = sphi 0, %s120
      %s123 = sphi 0, %s122
      %s137 = sphi 0, %s123
      %s141 = sphi 0, %s141
      %s143 = sphi 0, %s141
      %s144 = sphi 0, %s143
      %s158 = sphi 0, %s144
      %s164 = sphi 0, %s166
      %s167 = sphi 0, %s164
      %s168 = sphi 0, %s167
      %s184 = sphi 0, %s168
    $region4: #{tpu_custom_call.1} parent=1 // loop_header_branch
      %21 = sbr.rel (%p19) target = $region8
    $region5: #{tpu_custom_call.1} parent=1 // loop_body
      %s23 = ssub.s32 %s18, 1
      %s24 = ssub.s32 %s18, 2
      %s25 = sadd.s32 %s18, 1
      %s26 = ssub.s32 %s18, %s25
      %p27 = scmp.eq.s32.totalorder %s26, 0
      %s29 = sadd.s32 %s28, 1
      %s30 = scalar_select %p27, %s28, %s29
      %p33 = pneg %p27
      %p34 = scmp.eq.s32.totalorder %s18, 1
      %p35 = por %p33, %p34
      %p36 = scmp.ne.s32.totalorder %s28, %s31
      %p37 = scmp.eq.s32.totalorder %s18, 0
      %p38 = por %p36, %p37
      %p39 = scmp.ne.s32.totalorder %s28, %s31
      %p40 = scmp.eq.s32.totalorder %s23, 1
      %p41 = por %p39, %p40
      %p42 = scmp.ne.s32.totalorder %s31, %s32
      %p43 = scmp.eq.s32.totalorder %s23, 0
      %p44 = por %p42, %p43
      %p45 = scmp.ne.s32.totalorder %s31, %s32
      %p46 = scmp.eq.s32.totalorder %s24, 1
      %p47 = por %p45, %p46
      %p49 = scmp.ne.s32.totalorder %s32, %s48
      %p50 = scmp.eq.s32.totalorder %s24, 0
      %p51 = por %p49, %p50
      %s52 = ssub.s32 %s18, %s25
      %p53 = scmp.eq.s32.totalorder %s52, 0
      %s55 = sadd.s32 %s54, 1
      %s56 = scalar_select %p53, %s54, %s55
      %p59 = pneg %p53
      %p60 = scmp.eq.s32.totalorder %s18, 1
      %p61 = por %p59, %p60
      %p62 = scmp.ne.s32.totalorder %s54, %s57
      %p63 = scmp.eq.s32.totalorder %s18, 0
      %p64 = por %p62, %p63
      %p65 = scmp.ne.s32.totalorder %s54, %s57
      %p66 = scmp.eq.s32.totalorder %s23, 1
      %p67 = por %p65, %p66
      %p68 = scmp.ne.s32.totalorder %s57, %s58
      %p69 = scmp.eq.s32.totalorder %s23, 0
      %p70 = por %p68, %p69
      %p71 = scmp.ne.s32.totalorder %s57, %s58
      %p72 = scmp.eq.s32.totalorder %s24, 1
      %p73 = por %p71, %p72
      %p75 = scmp.ne.s32.totalorder %s58, %s74
      %p76 = scmp.eq.s32.totalorder %s24, 0
      %p77 = por %p75, %p76
      %s79 = sadd.s32 %s78, 1
      %p82 = scmp.eq.s32.totalorder %s18, 1
      %p83 = scmp.ne.s32.totalorder %s78, %s80
      %p84 = scmp.eq.s32.totalorder %s18, 0
      %p85 = por %p83, %p84
      %p86 = scmp.ne.s32.totalorder %s78, %s80
      %p87 = scmp.eq.s32.totalorder %s23, 1
      %p88 = por %p86, %p87
      %p89 = scmp.ne.s32.totalorder %s80, %s81
      %p90 = scmp.eq.s32.totalorder %s23, 0
      %p91 = por %p89, %p90
      %p92 = scmp.ne.s32.totalorder %s80, %s81
      %p93 = scmp.eq.s32.totalorder %s24, 1
      %p94 = por %p92, %p93
      %p96 = scmp.ne.s32.totalorder %s81, %s95
      %p97 = scmp.eq.s32.totalorder %s24, 0
      %p98 = por %p96, %p97
      %s100 = sadd.s32 %s99, 1
      %p103 = scmp.eq.s32.totalorder %s18, 1
      %p104 = scmp.ne.s32.totalorder %s99, %s101
      %p105 = scmp.eq.s32.totalorder %s18, 0
      %p106 = por %p104, %p105
      %p107 = scmp.ne.s32.totalorder %s99, %s101
      %p108 = scmp.eq.s32.totalorder %s23, 1
      %p109 = por %p107, %p108
      %p110 = scmp.ne.s32.totalorder %s101, %s102
      %p111 = scmp.eq.s32.totalorder %s23, 0
      %p112 = por %p110, %p111
      %p113 = scmp.ne.s32.totalorder %s101, %s102
      %p114 = scmp.eq.s32.totalorder %s24, 1
      %p115 = por %p113, %p114
      %p117 = scmp.ne.s32.totalorder %s102, %s116
      %p118 = scmp.eq.s32.totalorder %s24, 0
      %p119 = por %p117, %p118
      %s121 = sadd.s32 %s120, 1
      %p124 = scmp.eq.s32.totalorder %s18, 1
      %p125 = scmp.ne.s32.totalorder %s120, %s122
      %p126 = scmp.eq.s32.totalorder %s18, 0
      %p127 = por %p125, %p126
      %p128 = scmp.ne.s32.totalorder %s120, %s122
      %p129 = scmp.eq.s32.totalorder %s23, 1
      %p130 = por %p128, %p129
      %p131 = scmp.ne.s32.totalorder %s122, %s123
      %p132 = scmp.eq.s32.totalorder %s23, 0
      %p133 = por %p131, %p132
      %p134 = scmp.ne.s32.totalorder %s122, %s123
      %p135 = scmp.eq.s32.totalorder %s24, 1
      %p136 = por %p134, %p135
      %p138 = scmp.ne.s32.totalorder %s123, %s137
      %p139 = scmp.eq.s32.totalorder %s24, 0
      %p140 = por %p138, %p139
      %s142 = sadd.s32 %s141, 1
      %p145 = scmp.eq.s32.totalorder %s18, 1
      %p146 = scmp.ne.s32.totalorder %s141, %s143
      %p147 = scmp.eq.s32.totalorder %s18, 0
      %p148 = por %p146, %p147
      %p149 = scmp.ne.s32.totalorder %s141, %s143
      %p150 = scmp.eq.s32.totalorder %s23, 1
      %p151 = por %p149, %p150
      %p152 = scmp.ne.s32.totalorder %s143, %s144
      %p153 = scmp.eq.s32.totalorder %s23, 0
      %p154 = por %p152, %p153
      %p155 = scmp.ne.s32.totalorder %s143, %s144
      %p156 = scmp.eq.s32.totalorder %s24, 1
      %p157 = por %p155, %p156
      %p159 = scmp.ne.s32.totalorder %s144, %s158
      %p160 = scmp.eq.s32.totalorder %s24, 0
      %p161 = por %p159, %p160
      %s162 = ssub.s32 %s18, %s25
      %p163 = scmp.eq.s32.totalorder %s162, 0
      %s165 = sadd.s32 %s164, 1
      %s166 = scalar_select %p163, %s164, %s165
      %p169 = pneg %p163
      %p170 = scmp.eq.s32.totalorder %s18, 1
      %p171 = por %p169, %p170
      %p172 = scmp.ne.s32.totalorder %s164, %s167
      %p173 = scmp.eq.s32.totalorder %s18, 0
      %p174 = por %p172, %p173
      %p175 = scmp.ne.s32.totalorder %s164, %s167
      %p176 = scmp.eq.s32.totalorder %s23, 1
      %p177 = por %p175, %p176
      %p178 = scmp.ne.s32.totalorder %s167, %s168
      %p179 = scmp.eq.s32.totalorder %s23, 0
      %p180 = por %p178, %p179
      %p181 = scmp.ne.s32.totalorder %s167, %s168
      %p182 = scmp.eq.s32.totalorder %s24, 1
      %p183 = por %p181, %p182
      %p185 = scmp.ne.s32.totalorder %s168, %s184
      %p186 = scmp.eq.s32.totalorder %s24, 0
      %p187 = por %p185, %p186
      %p188 = scmp.le.s32.totalorder 1, %s18
      %p189 = scmp.lt.s32.totalorder %s18, 3
      %p190 = pnand %p188, %p189
      %p191 = pneg %p190
      // Predicated region
      $region9: #{tpu_custom_call.1} parent=5 // pred_check
        _
      $region10: #{tpu_custom_call.1} parent=5 // pred_check_branch
        %193 = sbr.rel (%p190) target = $region12
      $region11: #{tpu_custom_call.1} parent=5 // pred_region
        %s194 = ssub.s32 %s18, 1
        // Predicated region
        $region13: #{tpu_custom_call.1} parent=11 // pred_check
          %p195 = pneg %p91
        $region14: #{tpu_custom_call.1} parent=11 // pred_check_branch
          %197 = sbr.rel (%p195) target = $region16
        $region15: #{tpu_custom_call.1} parent=11 // pred_region
          _
        $region16: #{tpu_custom_call.1} parent=11 // pred_fallthru
          _
        // Predicated region
        $region17: #{tpu_custom_call.1} parent=11 // pred_check
          %p198 = pneg %p112
        $region18: #{tpu_custom_call.1} parent=11 // pred_check_branch
          %200 = sbr.rel (%p198) target = $region20
        $region19: #{tpu_custom_call.1} parent=11 // pred_region
          _
        $region20: #{tpu_custom_call.1} parent=11 // pred_fallthru
          _
        // Predicated region
        $region21: #{tpu_custom_call.1} parent=11 // pred_check
          %p201 = pneg %p133
        $region22: #{tpu_custom_call.1} parent=11 // pred_check_branch
          %203 = sbr.rel (%p201) target = $region24
        $region23: #{tpu_custom_call.1} parent=11 // pred_region
          _
        $region24: #{tpu_custom_call.1} parent=11 // pred_fallthru
          _
        // Predicated region
        $region25: #{tpu_custom_call.1} parent=11 // pred_check
          %p204 = pneg %p154
        $region26: #{tpu_custom_call.1} parent=11 // pred_check_branch
          %206 = sbr.rel (%p204) target = $region28
        $region27: #{tpu_custom_call.1} parent=11 // pred_region
          _
        $region28: #{tpu_custom_call.1} parent=11 // pred_fallthru
          _
      $region12: #{tpu_custom_call.1} parent=5 // pred_fallthru
        _
      %p207 = scmp.lt.s32.totalorder %s18, 2
      // Predicated region
      $region29: #{tpu_custom_call.1} parent=5 // pred_check
        %p208 = pneg %p207
      $region30: #{tpu_custom_call.1} parent=5 // pred_check_branch
        %210 = sbr.rel (%p208) target = $region32
      $region31: #{tpu_custom_call.1} parent=5 // pred_region
        // Predicated region
        $region33: #{tpu_custom_call.1} parent=31 // pred_check
          %p211 = pneg %p38
        $region34: #{tpu_custom_call.1} parent=31 // pred_check_branch
          %213 = sbr.rel (%p211) target = $region36
        $region35: #{tpu_custom_call.1} parent=31 // pred_region
          %s214 = sand.u32 %s28, 1
          %s215 = scalar_lea.sflag [#allocation8], %s214
          %s216 = sand.u32 %s28, 1
          %s217 = smul.addr %s216, 32
          %s218 = scalar_lea.vmem [#allocation7], %s217
          %220 = vsyncadd %s215, 0
          %s221 = smul.addr %s18, 4
          %s222 = smul.addr %s221, 8
          %s223 = scalar_lea.hbm %s0, %s222
          %s224 = sshll.u32 %s223, 4
          %s225 = int_to_ptr.hbm [resolvable:$true] %s224
          %s226 = sshll.u32 %s218, 4
          %s227 = int_to_ptr.vmem [resolvable:$true] %s226
          %232 = dma.hbm_to_vmem [thread:$0]  %s225, 512, %s227, %s215, 256, 256, 16
        $region36: #{tpu_custom_call.1} parent=31 // pred_fallthru
          _
        // Predicated region
        $region37: #{tpu_custom_call.1} parent=31 // pred_check
          %p233 = pneg %p64
        $region38: #{tpu_custom_call.1} parent=31 // pred_check_branch
          %235 = sbr.rel (%p233) target = $region40
        $region39: #{tpu_custom_call.1} parent=31 // pred_region
          %s236 = sand.u32 %s54, 1
          %s237 = scalar_lea.sflag [#allocation10], %s236
          %s238 = sand.u32 %s54, 1
          %s239 = smul.addr %s238, 32
          %s240 = scalar_lea.vmem [#allocation9], %s239
          %242 = vsyncadd %s237, 0
          %s243 = smul.addr %s18, 4
          %s244 = smul.addr %s243, 8
          %s245 = scalar_lea.hbm %s1, %s244
          %s246 = sshll.u32 %s245, 4
          %s247 = int_to_ptr.hbm [resolvable:$true] %s246
          %s248 = sshll.u32 %s240, 4
          %s249 = int_to_ptr.vmem [resolvable:$true] %s248
          %254 = dma.hbm_to_vmem [thread:$0]  %s247, 512, %s249, %s237, 256, 256, 16
        $region40: #{tpu_custom_call.1} parent=31 // pred_fallthru
          _
      $region32: #{tpu_custom_call.1} parent=5 // pred_fallthru
        _
      %p255 = scmp.le.s32.totalorder 1, %s18
      %p256 = scmp.lt.s32.totalorder %s18, 3
      %p257 = pnand %p255, %p256
      %p258 = pneg %p257
      // Predicated region
      $region41: #{tpu_custom_call.1} parent=5 // pred_check
        _
      $region42: #{tpu_custom_call.1} parent=5 // pred_check_branch
        %260 = sbr.rel (%p257) target = $region44
      $region43: #{tpu_custom_call.1} parent=5 // pred_region
        %s261 = ssub.s32 %s18, 1
        %s262 = sand.u32 %s31, 1
        %s263 = scalar_lea.sflag [#allocation8], %s262
        %s264 = sand.u32 %s31, 1
        %s265 = smul.addr %s264, 32
        %s266 = scalar_lea.vmem [#allocation7], %s265
        // Predicated region
        $region45: #{tpu_custom_call.1} parent=43 // pred_check
          %p267 = pneg %p44
        $region46: #{tpu_custom_call.1} parent=43 // pred_check_branch
          %269 = sbr.rel (%p267) target = $region48
        $region47: #{tpu_custom_call.1} parent=43 // pred_region
          %271 = dma.done %s263, 512
        $region48: #{tpu_custom_call.1} parent=43 // pred_fallthru
          _
        %s272 = sand.u32 %s57, 1
        %s273 = scalar_lea.sflag [#allocation10], %s272
        %s274 = sand.u32 %s57, 1
        %s275 = smul.addr %s274, 32
        %s276 = scalar_lea.vmem [#allocation9], %s275
        // Predicated region
        $region49: #{tpu_custom_call.1} parent=43 // pred_check
          %p277 = pneg %p70
        $region50: #{tpu_custom_call.1} parent=43 // pred_check_branch
          %279 = sbr.rel (%p277) target = $region52
        $region51: #{tpu_custom_call.1} parent=43 // pred_region
          %281 = dma.done %s273, 512
        $region52: #{tpu_custom_call.1} parent=43 // pred_fallthru
          _
        %s282 = sand.u32 %s31, 1
        %s283 = scalar_lea.sflag [#allocation8], %s282
        %s284 = sand.u32 %s31, 1
        %s285 = smul.addr %s284, 32
        %s286 = scalar_lea.vmem [#allocation7], %s285
        %p287 = pneg %p44
        %p288 = pneg %p41
        %s289 = sand.u32 %s57, 1
        %s290 = scalar_lea.sflag [#allocation10], %s289
        %s291 = sand.u32 %s57, 1
        %s292 = smul.addr %s291, 32
        %s293 = scalar_lea.vmem [#allocation9], %s292
        %p294 = pneg %p70
        %p295 = pneg %p67
        %p296 = pneg %p91
        %p297 = pneg %p88
        %p298 = pneg %p112
        %p299 = pneg %p109
        %p300 = pneg %p133
        %p301 = pneg %p130
        %p302 = pneg %p154
        %p303 = pneg %p151
        %p304 = pneg %p180
        %p305 = pneg %p177
        %p306 = scmp.lt.s32.totalorder %s23, 1
        %s307 = scalar_select %p306, %s23, 1
        %s308 = scalar_lea.vmem %s6, %s307
        %p309 = scmp.lt.s32.totalorder %s23, 1
        %s310 = scalar_select %p309, %s23, 1
        %s311 = scalar_lea.vmem %s6, %s310
        %vm312 = vcmask 57344
        %313 = vst.msk [vmem:[#allocation4] sm:$0x1] %vm312, 0.0
        %vm314 = vcmask 0
        %315 = vst.msk [vmem:[#allocation5] sm:$0x1] %vm314, 0.0
        %316 = vst.msk [vmem:[#allocation6] sm:$0x1] %vm314, 0.0
        %v317 = vld [vmem:[%s266] sm:$0xff]
        %v318 = vld [vmem:[%s266 + $0x8] sm:$0xff]
        %v319 = vld [vmem:[%s266 + $0x10] sm:$0xff]
        %v320 = vld [vmem:[%s266 + $0x18] sm:$0xff]
        %v321 = vld [vmem:[%s276] sm:$0xff]
        %v322 = vld [vmem:[%s276 + $0x8] sm:$0xff]
        %v323 = vld [vmem:[%s276 + $0x10] sm:$0xff]
        %v324 = vld [vmem:[%s276 + $0x18] sm:$0xff]
        %v325 = vmul.f32 %v317, %v317
        %v326 = vmul.f32 %v318, %v318
        %v327 = vmul.f32 %v319, %v319
        %v328 = vmul.f32 %v320, %v320
        %v329 = vadd.f32 %v325, %v326
        %330 = vadd.xlane.f32.xlu0 %v329
        %v331 = vpop.xlane.xlu0 %330
        %v332 = vadd.f32 %v327, %v328
        %333 = vadd.xlane.f32.xlu0 %v332
        %v334 = vpop.xlane.xlu0 %333
        %v337 = vlaneseq
        %v338 = vand.u32 %v337, 127
        %v339 = vperm.slane %v331, %v338
        %v340 = vadd.s32 %v338, 4294967288
        %v341 = vperm.slane %v334, %v340
        %vm342 = vcmask 130112
        %v343 = vsel %vm342, %v341, %v339
        %vm345 = vcmask 122880
        %346 = vst.msk [vmem:[#allocation2] sm:$0x1] %vm345, %v343
        %v347 = vmul.f32 %v321, %v321
        %v348 = vmul.f32 %v322, %v322
        %v349 = vmul.f32 %v323, %v323
        %v350 = vmul.f32 %v324, %v324
        %v351 = vadd.f32 %v347, %v348
        %352 = vadd.xlane.f32.xlu0 %v351
        %v353 = vpop.xlane.xlu0 %352
        %v354 = vadd.f32 %v349, %v350
        %355 = vadd.xlane.f32.xlu0 %v354
        %v356 = vpop.xlane.xlu0 %355
        %v359 = vperm.slane %v353, %v338
        %v360 = vperm.slane %v356, %v340
        %v361 = vsel %vm342, %v360, %v359
        %363 = vst.msk [vmem:[#allocation3] sm:$0x1] %vm345, %v361
        %v364 = vadd.f32 %v321, %v322
        %365 = vadd.xlane.f32.xlu0 %v364
        %v366 = vpop.xlane.xlu0 %365
        %v367 = vadd.f32 %v323, %v324
        %368 = vadd.xlane.f32.xlu0 %v367
        %v369 = vpop.xlane.xlu0 %368
        %v370 = vmul.f32 %v366, 0.00390625
        %v371 = vmul.f32 %v369, 0.00390625
        %v372 = vld [vmem:[#allocation4] sm:$0x1]
        %v373 = vld [vmem:[%s2] sm:$0xff]
        %v374 = vld [vmem:[%s2 + $0x8] sm:$0xff]
        %v377 = vperm.slane %v370, %v338
        %v378 = vperm.slane %v371, %v340
        %v379 = vsel %vm342, %v378, %v377
        %vm380 = vcmask 130048
        %v381 = vsel %vm380, %v379, 0
        %383 = vmatpush.msra.mxu0 0.0
        %384 = vmatpush.msra.mxu0 0.0
        %385 = vmatpush.msra.mxu0 0.0
        %386 = vmatpush.msra.mxu0 0.0
        %387 = vmatpush.msra.mxu0 0.0
        %388 = vmatpush.msra.mxu0 0.0
        %389 = vmatpush.msra.mxu0 0.0
        %390 = vmatpush.msra.mxu0 0.0
        %391 = vmatpush.msra.mxu0 0.0
        %392 = vmatpush.msra.mxu0 0.0
        %393 = vmatpush.msra.mxu0 0.0
        %394 = vmatpush.msra.mxu0 0.0
        %395 = vmatpush.msra.mxu0 0.0
        %396 = vmatpush.msra.mxu0 0.0
        %397 = vmatpush.msra.mxu0 %v374
        %398 = vmatpush.msra.mxu0 %v373
        %399 = vmatmul.f32.gmra.mxu0 %v381
        %v400 = vpop.f32.mrf.mxu0
        %v401 = vadd.f32 0.0, %v400
        %402 = vdwg.mxu0
        %v403 = vadd.f32 %v372, %v401
        %404 = vst.msk [vmem:[#allocation4] sm:$0x1] %vm312, %v403
        %v405 = vld [vmem:[#allocation4] sm:$0x1]
        %v406 = vld [vmem:[%s3] sm:$0x1]
        %v407 = vadd.f32 %v405, %v406
        %v408 = vmax.f32 %v407, 0.0
        %v409 = vld [vmem:[%s266] sm:$0xff]
        %v410 = vld [vmem:[%s266 + $0x8] sm:$0xff]
        %v411 = vld [vmem:[%s266 + $0x10] sm:$0xff]
        %v412 = vld [vmem:[%s266 + $0x18] sm:$0xff]
        %v413 = vld [vmem:[%s276] sm:$0xff]
        %v414 = vld [vmem:[%s276 + $0x8] sm:$0xff]
        %v415 = vld [vmem:[%s276 + $0x10] sm:$0xff]
        %v416 = vld [vmem:[%s276 + $0x18] sm:$0xff]
        %v417 = vld [vmem:[#allocation2] sm:$0x1]
        %v418 = vrsqrt.pop %v417
        %v419 = vmul.f32 %v418, %v417
        %v420 = vmul.f32 %v419, %v418
        %v421 = vmul.f32 0.5, %v420
        %v422 = vsub.f32 1.5, %v421
        %v423 = vmul.f32 %v418, %v422
        %v424 = vmul.f32 %v417, %v423
        %vm425 = vcmp.eq.f32.partialorder %v417, inf
        %v426 = vsel %vm425, %v417, %v424
        %vm427 = vcmp.eq.f32.partialorder %v417, 0.0
        %v428 = vand.u32 %v417, 2147483648
        %v429 = vsel %vm427, %v428, %v426
        %v430 = vadd.f32 %v429, 1e-06
        %v431 = vrcp.pop %v430
        %v432 = vmul.f32 %v430, %v431
        %v433 = vsub.f32 1.0, %v432
        %v434 = vmul.f32 %v431, %v433
        %v435 = vadd.f32 %v431, %v434
        %vm436 = vweird.f32 %v430
        %vm437 = vweird.f32 %v431
        %vm438 = vmor %vm436, %vm437
        %v439 = vsel %vm438, %v431, %v435
        %v440 = vand.u32 2147483647, %v430
        %vm441 = vcmp.eq.f32.partialorder %v440, 8.507059e+37
        %v442 = vand.u32 %v430, 2147483648
        %v443 = vor.u32 1.1754944e-38, %v442
        %v444 = vsel %vm441, %v443, %v439
        %v445 = vmul.f32 1.0, %v444
        %v446 = vld [vmem:[#allocation3] sm:$0x1]
        %v447 = vrsqrt.pop %v446
        %v448 = vmul.f32 %v447, %v446
        %v449 = vmul.f32 %v448, %v447
        %v450 = vmul.f32 0.5, %v449
        %v451 = vsub.f32 1.5, %v450
        %v452 = vmul.f32 %v447, %v451
        %v453 = vmul.f32 %v446, %v452
        %vm454 = vcmp.eq.f32.partialorder %v446, inf
        %v455 = vsel %vm454, %v446, %v453
        %vm456 = vcmp.eq.f32.partialorder %v446, 0.0
        %v457 = vand.u32 %v446, 2147483648
        %v458 = vsel %vm456, %v457, %v455
        %v459 = vadd.f32 %v458, 1e-06
        %v460 = vrcp.pop %v459
        %v461 = vmul.f32 %v459, %v460
        %v462 = vsub.f32 1.0, %v461
        %v463 = vmul.f32 %v460, %v462
        %v464 = vadd.f32 %v460, %v463
        %vm465 = vweird.f32 %v459
        %vm466 = vweird.f32 %v460
        %vm467 = vmor %vm465, %vm466
        %v468 = vsel %vm467, %v460, %v464
        %v469 = vand.u32 2147483647, %v459
        %vm470 = vcmp.eq.f32.partialorder %v469, 8.507059e+37
        %v471 = vand.u32 %v459, 2147483648
        %v472 = vor.u32 1.1754944e-38, %v471
        %v473 = vsel %vm470, %v472, %v468
        %v474 = vmul.f32 1.0, %v473
        %v475 = vperm.slane %v445, 0
        %v476 = vlaneseq
        %v477 = vshrl.u32 %v476, 7
        %479 = vset.pattern.permute.xlu0 %v477
        %480 = vperm.xlu0 %479, %v475
        %v481 = vpop.permute.xlu0 %480
        %v482 = vlaneseq
        %v483 = vshrl.u32 %v482, 7
        %v484 = vadd.s32 %v483, 8
        %485 = vset.pattern.permute.xlu0 %v484
        %486 = vperm.xlu0 %485, %v475
        %v487 = vpop.permute.xlu0 %486
        %v488 = vmul.f32 %v409, %v481
        %v489 = vmul.f32 %v410, %v481
        %v490 = vmul.f32 %v411, %v487
        %v491 = vmul.f32 %v412, %v487
        %v492 = vperm.slane %v474, 0
        %v493 = vlaneseq
        %v494 = vshrl.u32 %v493, 7
        %496 = vset.pattern.permute.xlu0 %v494
        %497 = vperm.xlu0 %496, %v492
        %v498 = vpop.permute.xlu0 %497
        %v499 = vlaneseq
        %v500 = vshrl.u32 %v499, 7
        %v501 = vadd.s32 %v500, 8
        %502 = vset.pattern.permute.xlu0 %v501
        %503 = vperm.xlu0 %502, %v492
        %v504 = vpop.permute.xlu0 %503
        %v505 = vmul.f32 %v413, %v498
        %v506 = vmul.f32 %v414, %v498
        %v507 = vmul.f32 %v415, %v504
        %v508 = vmul.f32 %v416, %v504
        %v509 = vsub.f32 %v488, %v505
        %v510 = vsub.f32 %v489, %v506
        %v511 = vsub.f32 %v490, %v507
        %v512 = vsub.f32 %v491, %v508
        %v513 = vmul.f32 %v509, %v509
        %v514 = vmul.f32 %v510, %v510
        %v515 = vmul.f32 %v511, %v511
        %v516 = vmul.f32 %v512, %v512
        %v517 = vadd.f32 %v513, %v514
        %518 = vadd.xlane.f32.xlu0 %v517
        %v519 = vpop.xlane.xlu0 %518
        %v520 = vadd.f32 %v515, %v516
        %521 = vadd.xlane.f32.xlu0 %v520
        %v522 = vpop.xlane.xlu0 %521
        %v523 = vmul.f32 %v519, 0.00390625
        %v524 = vmul.f32 %v522, 0.00390625
        %v525 = vld [vmem:[%s4] sm:$0xff]
        %v526 = vld [vmem:[%s5] sm:$0x1]
        %vm527 = vcmask 64512
        %v529 = vsel %vm527, %v408, 0
        %531 = vmatpush.msra.mxu0 0.0
        %532 = vmatpush.msra.mxu0 0.0
        %533 = vmatpush.msra.mxu0 0.0
        %534 = vmatpush.msra.mxu0 0.0
        %535 = vmatpush.msra.mxu0 0.0
        %536 = vmatpush.msra.mxu0 0.0
        %537 = vmatpush.msra.mxu0 0.0
        %538 = vmatpush.msra.mxu0 0.0
        %539 = vmatpush.msra.mxu0 0.0
        %540 = vmatpush.msra.mxu0 0.0
        %541 = vmatpush.msra.mxu0 0.0
        %542 = vmatpush.msra.mxu0 0.0
        %543 = vmatpush.msra.mxu0 0.0
        %544 = vmatpush.msra.mxu0 0.0
        %545 = vmatpush.msra.mxu0 0.0
        %546 = vmatpush.msra.mxu0 %v525
        %547 = vmatmul.f32.gmra.mxu0 %v529
        %v548 = vpop.f32.mrf.mxu0
        %v549 = vadd.f32 %v526, %v548
        %550 = vdwg.mxu0
        %v551 = vxor.u32 %v549, 2147483648
        %v552 = vmul.f32 %v551, 1.442695
        %v553 = vpow.pop %v552
        %v554 = vadd.f32 %v553, 1.0
        %v555 = vrcp.pop %v554
        %v556 = vmul.f32 %v554, %v555
        %v557 = vsub.f32 1.0, %v556
        %v558 = vmul.f32 %v555, %v557
        %v559 = vadd.f32 %v555, %v558
        %vm560 = vweird.f32 %v554
        %vm561 = vweird.f32 %v555
        %vm562 = vmor %vm560, %vm561
        %v563 = vsel %vm562, %v555, %v559
        %v564 = vand.u32 2147483647, %v554
        %vm565 = vcmp.eq.f32.partialorder %v564, 8.507059e+37
        %v566 = vand.u32 %v554, 2147483648
        %v567 = vor.u32 1.1754944e-38, %v566
        %v568 = vsel %vm565, %v567, %v563
        %v569 = vmul.f32 1.0, %v568
        %v570 = vld [vmem:[#allocation5] sm:$0x1]
        %v573 = vperm.slane %v523, %v338
        %v574 = vperm.slane %v524, %v340
        %v575 = vsel %vm342, %v574, %v573
        %v577 = vmul.f32 %v569, %v575
        %v578 = vsel %vm345, %v577, 0.0
        %579 = vadd.xlane.f32.xlu0 %v578
        %v580 = vpop.xlane.xlu0 %579
        %v581 = vadd.f32 %v570, %v580
        %582 = vst.msk [vmem:[#allocation5] sm:$0x1] %vm314, %v581
        %v583 = vld [vmem:[#allocation6] sm:$0x1]
        %v584 = vsel %vm345, %v569, 0.0
        %585 = vadd.xlane.f32.xlu0 %v584
        %v586 = vpop.xlane.xlu0 %585
        %v587 = vadd.f32 %v583, %v586
        %588 = vst.msk [vmem:[#allocation6] sm:$0x1] %vm314, %v587
        %v589 = vld [vmem:[#allocation5] sm:$0x1]
        %v590 = vld [vmem:[#allocation6] sm:$0x1]
        %v591 = vrcp.pop %v590
        %v592 = vmul.f32 %v590, %v591
        %v593 = vsub.f32 1.0, %v592
        %v594 = vmul.f32 %v591, %v593
        %v595 = vadd.f32 %v591, %v594
        %vm596 = vweird.f32 %v590
        %vm597 = vweird.f32 %v591
        %vm598 = vmor %vm596, %vm597
        %v599 = vsel %vm598, %v591, %v595
        %v600 = vand.u32 2147483647, %v590
        %vm601 = vcmp.eq.f32.partialorder %v600, 8.507059e+37
        %v602 = vand.u32 %v590, 2147483648
        %v603 = vor.u32 1.1754944e-38, %v602
        %v604 = vsel %vm601, %v603, %v599
        %v605 = vmul.f32 %v589, %v604
        %606 = vst.msk [vmem:[%s311] sm:$0x1] %vm314, %v605
        %p607 = scmp.lt.s32.totalorder %s23, 1
        %s608 = scalar_select %p607, %s23, 1
        %s609 = scalar_lea.vmem %s6, %s608
        // Predicated region
        $region53: #{tpu_custom_call.1} parent=43 // pred_check
          %p610 = pneg %p177
        $region54: #{tpu_custom_call.1} parent=43 // pred_check_branch
          %612 = sbr.rel (%p610) target = $region56
        $region55: #{tpu_custom_call.1} parent=43 // pred_region
          _
        $region56: #{tpu_custom_call.1} parent=43 // pred_fallthru
          _
      $region44: #{tpu_custom_call.1} parent=5 // pred_fallthru
        _
      %p613 = scmp.le.s32.totalorder 2, %s18
      // Predicated region
      $region57: #{tpu_custom_call.1} parent=5 // pred_check
        %p614 = pneg %p613
      $region58: #{tpu_custom_call.1} parent=5 // pred_check_branch
        %616 = sbr.rel (%p614) target = $region60
      $region59: #{tpu_custom_call.1} parent=5 // pred_region
        %s617 = ssub.s32 %s18, 2
        // Predicated region
        $region61: #{tpu_custom_call.1} parent=59 // pred_check
          %p618 = pneg %p183
        $region62: #{tpu_custom_call.1} parent=59 // pred_check_branch
          %620 = sbr.rel (%p618) target = $region64
        $region63: #{tpu_custom_call.1} parent=59 // pred_region
          %p621 = scmp.lt.s32.totalorder %s24, 1
          %s622 = scalar_select %p621, %s24, 1
          %s623 = scalar_lea.vmem %s6, %s622
        $region64: #{tpu_custom_call.1} parent=59 // pred_fallthru
          _
      $region60: #{tpu_custom_call.1} parent=5 // pred_fallthru
        _
    $region6: #{tpu_custom_call.1} parent=1 // loop_footer
      %s22 = sadd.s32 1, %s18
    $region7: #{tpu_custom_call.1} parent=1 // loop_footer_branch
      %17 = sbr.rel target = $region3
    $region8: #{tpu_custom_call.1} parent=1 // loop_exit
      _
    %624 = vsyncpa [#allocation8], 1
    %s625 = scalar_lea.sflag [#allocation8], 1
    %626 = vsyncpa %s625, 1
    %627 = vsyncpa [#allocation10], 1
    %s628 = scalar_lea.sflag [#allocation10], 1
    %629 = vsyncpa %s628, 1

</llo_original>
